<compile_context>
chip_gen: v7x
topology: tpu7x:2x2x1
jax: 0.10.0
libtpu: 0.0.40
codegen_flags: <defaults>
</compile_context>

<pallas_src>
import jax
import jax.numpy as jnp
from jax.experimental import pallas as pl
from jax.experimental.pallas import tpu as pltpu

_LANES = 128        # padded feature width inside the kernel (one vreg lane span)
_NEG_BIG = -1e30    # "-inf" for the masked softmax (f32 path only)


def _round_up(x, m):
    return ((x + m - 1) // m) * m


def _make_kernel(in_dims, n_actions):
    """in_dims: true input feature count. n_actions: policy width."""

    def kernel(x_ref, w_ref, b_ref, out_ref):
        f32 = jnp.float32
        bf16 = jnp.bfloat16

        # bf16 MXU operands, f32 accumulation (3-6x fewer MXU passes than f32).
        xb = x_ref[...].astype(bf16)                                    # (TB, in_dims)

        # ---- shared trunk: Linear -> ReLU -> Linear -> ReLU (128-lane padded) ----
        h = jnp.dot(xb, w_ref[0, :in_dims, :],
                    preferred_element_type=f32) + b_ref[0:1, :]
        h = jnp.maximum(h, 0.0)                                         # (TB, 128) f32
        h = jnp.dot(h.astype(bf16), w_ref[1],
                    preferred_element_type=f32) + b_ref[1:2, :]
        h = jnp.maximum(h, 0.0)

        # ---- fused policy/value hidden layer: lanes [policy | value | 0] ----
        pv = jnp.dot(h.astype(bf16), w_ref[2],
                     preferred_element_type=f32) + b_ref[2:3, :]
        pv = jnp.maximum(pv, 0.0)

        # ---- fused block-diagonal output: lanes [0,A) = logits, lane A = value ----
        o = jnp.dot(pv.astype(bf16), w_ref[3],
                    preferred_element_type=f32) + b_ref[3:4, :]

        # masked softmax (f32) over the real action lanes only
        lane = jax.lax.broadcasted_iota(jnp.int32, o.shape, 1)
        is_logit = lane < n_actions
        masked = jnp.where(is_logit, o, _NEG_BIG)
        m = jnp.max(masked, axis=-1, keepdims=True)
        e = jnp.where(is_logit, jnp.exp(masked - m), 0.0)
        denom = jnp.sum(e, axis=-1, keepdims=True)
        probs = e * pl.reciprocal(denom, approx=False)

        # Two direct lane-masked stores; no fused (TB,128) temporary.
        out_ref[:, :n_actions] = probs[:, :n_actions].astype(out_ref.dtype)
        out_ref[:, n_actions:n_actions + 1] = (
            o[:, n_actions:n_actions + 1].astype(out_ref.dtype))

    return kernel


def pack_params(p, input_dims, n_actions):
    """Pack all weights/biases into lane-dense, zero-padded VMEM slabs.
    Weights are stored bf16 (MXU operands); biases stay f32 (added post-accum)."""
    h1 = p["ws1"].shape[1]
    h2 = p["ws2"].shape[1]
    hp = p["wp1"].shape[1]
    hv = p["wv1"].shape[1]
    assert input_dims <= _LANES
    assert max(h1, h2, hp + hv, n_actions + 1) <= _LANES

    w = jnp.zeros((4, _LANES, _LANES), jnp.float32)
    b = jnp.zeros((4, _LANES), jnp.float32)

    # shared layer 1 / 2
    w = w.at[0, :input_dims, :h1].set(p["ws1"])
    b = b.at[0, :h1].set(p["bs1"].reshape(-1))
    w = w.at[1, :h1, :h2].set(p["ws2"])
    b = b.at[1, :h2].set(p["bs2"].reshape(-1))
    # fused policy/value hidden layer
    w = w.at[2, :h2, :hp].set(p["wp1"])
    w = w.at[2, :h2, hp:hp + hv].set(p["wv1"])
    b = b.at[2, :hp].set(p["bp1"].reshape(-1))
    b = b.at[2, hp:hp + hv].set(p["bv1"].reshape(-1))
    # fused block-diagonal output projection: [logits | value]
    w = w.at[3, :hp, :n_actions].set(p["wpo"])
    w = w.at[3, hp:hp + hv, n_actions:n_actions + 1].set(p["wvo"])
    b = b.at[3, :n_actions].set(p["bpo"].reshape(-1))
    b = b.at[3, n_actions:n_actions + 1].set(p["bvo"].reshape(-1))
    return w.astype(jnp.bfloat16), b


def _choose_batch_tile(batch, batch_tile):
    """Pick an 8-aligned batch tile; keep >=2 grid steps (v7x megacore) and
    prefer an even step count for balanced TensorCore shards."""
    tb = max(8, _round_up(min(batch_tile, batch), 8))
    if batch > 16:
        tb = min(tb, _round_up(pl.cdiv(batch, 2), 8))
        steps = pl.cdiv(batch, tb)
        if steps > 1 and steps % 2 == 1:
            tb = max(8, _round_up(pl.cdiv(batch, steps + 1), 8))
    return tb


def ppo_network_discrete_forward(x, w_slab, b_slab, n_actions, *, batch_tile=2048):
    """x: (batch, input_dims) f32. Returns (policy (batch, A), value (batch, 1))."""
    batch, in_dims = x.shape
    tb = _choose_batch_tile(batch, batch_tile)
    grid = (pl.cdiv(batch, tb),)   # ragged tail tile handled by Pallas masking

    out = pl.pallas_call(
        _make_kernel(in_dims, n_actions),
        out_shape=jax.ShapeDtypeStruct((batch, n_actions + 1), jnp.float32),
        grid=grid,
        in_specs=[
            pl.BlockSpec((tb, in_dims), lambda i: (i, 0)),             # activations: tiled
            pl.BlockSpec((4, _LANES, _LANES), lambda i: (0, 0, 0)),    # weights: resident bf16
            pl.BlockSpec((4, _LANES), lambda i: (0, 0)),               # biases: resident f32
        ],
        out_specs=pl.BlockSpec((tb, n_actions + 1), lambda i: (i, 0)),
        compiler_params=pltpu.CompilerParams(
            dimension_semantics=("parallel",),
            vmem_limit_bytes=32 * 1024 * 1024),
    )(x, w_slab, b_slab)

    policy = out[:, :n_actions]
    value = out[:, n_actions:n_actions + 1]
    return policy, value


def init_params(key, input_dims, shared_dims, policy_dims, value_dims, output_dims):
    """He init (mirrors kaiming_normal_ fan_in / relu). Biases given small
    nonzero values so the packed-bias path is exercised."""
    def he(k, fan_in, fan_out):
        std = (2.0 / fan_in) ** 0.5
        return jax.random.normal(k, (fan_in, fan_out), jnp.float32) * std

    def bias(k, n):
        return jax.random.uniform(k, (1, n), jnp.float32, -0.1, 0.1)

    ks = jax.random.split(key, 12)
    p = {}
    p["ws1"] = he(ks[0], input_dims, shared_dims[0]);     p["bs1"] = bias(ks[1], shared_dims[0])
    p["ws2"] = he(ks[2], shared_dims[0], shared_dims[1]); p["bs2"] = bias(ks[3], shared_dims[1])
    p["wp1"] = he(ks[4], shared_dims[1], policy_dims[0]); p["bp1"] = bias(ks[5], policy_dims[0])
    p["wpo"] = he(ks[6], policy_dims[0], output_dims);    p["bpo"] = bias(ks[7], output_dims)
    p["wv1"] = he(ks[8], shared_dims[1], value_dims[0]);  p["bv1"] = bias(ks[9], value_dims[0])
    p["wvo"] = he(ks[10], value_dims[0], 1);              p["bvo"] = bias(ks[11], 1)
    return p


def _reference_forward(x, p, compute_dtype=jnp.float32):
    """Pure-JAX reference (same math as the PyTorch module). With
    compute_dtype=bfloat16 it emulates the kernel's precision (bf16 operands,
    f32 accumulation)."""
    def lin(a, w, b):
        return jnp.dot(a.astype(compute_dtype), w.astype(compute_dtype),
                       preferred_element_type=jnp.float32) + b

    h = jnp.maximum(lin(x, p["ws1"], p["bs1"]), 0.0)
    h = jnp.maximum(lin(h, p["ws2"], p["bs2"]), 0.0)
    pol = jnp.maximum(lin(h, p["wp1"], p["bp1"]), 0.0)
    logits = lin(pol, p["wpo"], p["bpo"])
    policy = jax.nn.softmax(logits, axis=-1)
    v = jnp.maximum(lin(h, p["wv1"], p["bv1"]), 0.0)
    value = lin(v, p["wvo"], p["bvo"])
    return policy, value


if __name__ == "__main__":
    key = jax.random.PRNGKey(0)
    k_x, k_p, k_x2 = jax.random.split(key, 3)

    input_dims = 16
    shared_hidden_dims = [32, 32]
    policy_hidden_dims = [32]
    value_hidden_dims = [32]
    output_dims = 8

    params = init_params(k_p, input_dims, shared_hidden_dims,
                         policy_hidden_dims, value_hidden_dims, output_dims)
    w_slab, b_slab = pack_params(params, input_dims, output_dims)

    def check(x, policy, value, batch):
        assert policy.shape == (batch, output_dims)
        assert value.shape == (batch, 1)
        # Tight check vs a precision-matched (bf16 operand / f32 accum) reference.
        ref_pb, ref_vb = _reference_forward(x, params, jnp.bfloat16)
        assert jnp.allclose(policy, ref_pb, atol=1e-2, rtol=1e-2)
        assert jnp.allclose(value, ref_vb, atol=1e-2, rtol=1e-2)
        # Loose check vs the full-f32 reference (bf16 matmul precision).
        ref_p, ref_v = _reference_forward(x, params)
        assert jnp.allclose(policy, ref_p, atol=5e-2, rtol=5e-2)
        assert jnp.allclose(value, ref_v, atol=5e-2, rtol=5e-2)
        assert jnp.allclose(jnp.sum(policy, axis=-1), 1.0, atol=1e-5)

    # --- small batch (single grid step, 8-row tile) ---
    batch = 8
    x = jax.random.normal(k_x, (batch, input_dims), jnp.float32)
    policy, value = ppo_network_discrete_forward(x, w_slab, b_slab, output_dims)
    jax.block_until_ready((policy, value))
    check(x, policy, value, batch)

    # --- larger, non-multiple batch, default tile: 2-step grid + ragged tail ---
    batch2 = 300
    x2 = jax.random.normal(k_x2, (batch2, input_dims), jnp.float32)
    policy2, value2 = ppo_network_discrete_forward(x2, w_slab, b_slab, output_dims)
    jax.block_until_ready((policy2, value2))
    check(x2, policy2, value2, batch2)

    # --- small tile: multi-step grid, even-step adjustment (3 -> 4), masked tail ---
    policy3, value3 = ppo_network_discrete_forward(
        x2, w_slab, b_slab, output_dims, batch_tile=128)
    jax.block_until_ready((policy3, value3))
    check(x2, policy3, value3, batch2)

    print("KERNEL_OK")
</pallas_src>

<mosaic_0001>
module attributes {stable_mosaic.version = 11 : i64} {
  func.func @kernel(%arg0: i32, %arg1: memref<8x16xf32, #tpu.memory_space<vmem>>, %arg2: memref<4x128x128xbf16, #tpu.memory_space<vmem>>, %arg3: memref<4x128xf32, #tpu.memory_space<vmem>>, %arg4: memref<8x9xf32, #tpu.memory_space<vmem>>) attributes {dimension_semantics = [#tpu.dimension_semantics<parallel>], iteration_bounds = array<i64: 1>, scalar_prefetch = 0 : i64, scratch_operands = 0 : i64, tpu.core_type = #tpu.core_type<tc>, window_params = [{transform_indices = @transform_0, window_bounds = array<i64: 8, 16>}, {pipeline_mode = #tpu.pipeline_mode<synchronous>, transform_indices = @transform_1, window_bounds = array<i64: 4, 128, 128>}, {pipeline_mode = #tpu.pipeline_mode<synchronous>, transform_indices = @transform_2, window_bounds = array<i64: 4, 128>}, {transform_indices = @transform_3, window_bounds = array<i64: 8, 9>}]} {
    %c0 = arith.constant 0 : index
    %c0_0 = arith.constant 0 : index
    %0 = vector.load %arg1[%c0, %c0_0] : memref<8x16xf32, #tpu.memory_space<vmem>>, vector<8x16xf32>
    %1 = arith.truncf %0 : vector<8x16xf32> to vector<8x16xbf16>
    %c0_1 = arith.constant 0 : index
    %c0_2 = arith.constant 0 : index
    %c0_3 = arith.constant 0 : index
    %2 = vector.load %arg2[%c0_1, %c0_2, %c0_3] : memref<4x128x128xbf16, #tpu.memory_space<vmem>>, vector<1x16x128xbf16>
    %3 = vector.shape_cast %2 : vector<1x16x128xbf16> to vector<16x128xbf16>
    %cst = arith.constant dense<0.000000e+00> : vector<8x128xf32>
    %4 = tpu.matmul %1, %3, %cst {dimension_numbers = #tpu.dot_dimension_numbers<[1], [0], [0], [1], [0, 0, 1, 1], [], []>} : vector<8x16xbf16>, vector<16x128xbf16>, vector<8x128xf32> -> vector<8x128xf32>
    %c0_4 = arith.constant 0 : index
    %c0_5 = arith.constant 0 : index
    %5 = vector.load %arg3[%c0_4, %c0_5] : memref<4x128xf32, #tpu.memory_space<vmem>>, vector<1x128xf32>
    %6 = vector.broadcast %5 : vector<1x128xf32> to vector<8x128xf32>
    %7 = arith.addf %4, %6 : vector<8x128xf32>
    %cst_6 = arith.constant 0.000000e+00 : f32
    %8 = vector.broadcast %cst_6 : f32 to vector<8x128xf32>
    %9 = arith.maximumf %7, %8 : vector<8x128xf32>
    %10 = arith.truncf %9 : vector<8x128xf32> to vector<8x128xbf16>
    %c1 = arith.constant 1 : index
    %c0_7 = arith.constant 0 : index
    %c0_8 = arith.constant 0 : index
    %11 = vector.load %arg2[%c1, %c0_7, %c0_8] : memref<4x128x128xbf16, #tpu.memory_space<vmem>>, vector<1x128x128xbf16>
    %12 = vector.shape_cast %11 : vector<1x128x128xbf16> to vector<128x128xbf16>
    %cst_9 = arith.constant dense<0.000000e+00> : vector<8x128xf32>
    %13 = tpu.matmul %10, %12, %cst_9 {dimension_numbers = #tpu.dot_dimension_numbers<[1], [0], [0], [1], [0, 0, 1, 1], [], []>} : vector<8x128xbf16>, vector<128x128xbf16>, vector<8x128xf32> -> vector<8x128xf32>
    %c1_10 = arith.constant 1 : index
    %c0_11 = arith.constant 0 : index
    %14 = vector.load %arg3[%c1_10, %c0_11] : memref<4x128xf32, #tpu.memory_space<vmem>>, vector<1x128xf32>
    %15 = vector.broadcast %14 : vector<1x128xf32> to vector<8x128xf32>
    %16 = arith.addf %13, %15 : vector<8x128xf32>
    %cst_12 = arith.constant 0.000000e+00 : f32
    %17 = vector.broadcast %cst_12 : f32 to vector<8x128xf32>
    %18 = arith.maximumf %16, %17 : vector<8x128xf32>
    %19 = arith.truncf %18 : vector<8x128xf32> to vector<8x128xbf16>
    %c2 = arith.constant 2 : index
    %c0_13 = arith.constant 0 : index
    %c0_14 = arith.constant 0 : index
    %20 = vector.load %arg2[%c2, %c0_13, %c0_14] : memref<4x128x128xbf16, #tpu.memory_space<vmem>>, vector<1x128x128xbf16>
    %21 = vector.shape_cast %20 : vector<1x128x128xbf16> to vector<128x128xbf16>
    %cst_15 = arith.constant dense<0.000000e+00> : vector<8x128xf32>
    %22 = tpu.matmul %19, %21, %cst_15 {dimension_numbers = #tpu.dot_dimension_numbers<[1], [0], [0], [1], [0, 0, 1, 1], [], []>} : vector<8x128xbf16>, vector<128x128xbf16>, vector<8x128xf32> -> vector<8x128xf32>
    %c2_16 = arith.constant 2 : index
    %c0_17 = arith.constant 0 : index
    %23 = vector.load %arg3[%c2_16, %c0_17] : memref<4x128xf32, #tpu.memory_space<vmem>>, vector<1x128xf32>
    %24 = vector.broadcast %23 : vector<1x128xf32> to vector<8x128xf32>
    %25 = arith.addf %22, %24 : vector<8x128xf32>
    %cst_18 = arith.constant 0.000000e+00 : f32
    %26 = vector.broadcast %cst_18 : f32 to vector<8x128xf32>
    %27 = arith.maximumf %25, %26 : vector<8x128xf32>
    %28 = arith.truncf %27 : vector<8x128xf32> to vector<8x128xbf16>
    %c3 = arith.constant 3 : index
    %c0_19 = arith.constant 0 : index
    %c0_20 = arith.constant 0 : index
    %29 = vector.load %arg2[%c3, %c0_19, %c0_20] : memref<4x128x128xbf16, #tpu.memory_space<vmem>>, vector<1x128x128xbf16>
    %30 = vector.shape_cast %29 : vector<1x128x128xbf16> to vector<128x128xbf16>
    %cst_21 = arith.constant dense<0.000000e+00> : vector<8x128xf32>
    %31 = tpu.matmul %28, %30, %cst_21 {dimension_numbers = #tpu.dot_dimension_numbers<[1], [0], [0], [1], [0, 0, 1, 1], [], []>} : vector<8x128xbf16>, vector<128x128xbf16>, vector<8x128xf32> -> vector<8x128xf32>
    %c3_22 = arith.constant 3 : index
    %c0_23 = arith.constant 0 : index
    %32 = vector.load %arg3[%c3_22, %c0_23] : memref<4x128xf32, #tpu.memory_space<vmem>>, vector<1x128xf32>
    %33 = vector.broadcast %32 : vector<1x128xf32> to vector<8x128xf32>
    %34 = arith.addf %31, %33 : vector<8x128xf32>
    %35 = tpu.iota {dimensions = array<i32: 1>} : vector<8x128xi32>
    %c8_i32 = arith.constant 8 : i32
    %36 = vector.broadcast %c8_i32 : i32 to vector<8x128xi32>
    %37 = arith.cmpi slt, %35, %36 : vector<8x128xi32>
    %cst_24 = arith.constant -1.000000e+30 : f32
    %38 = vector.broadcast %cst_24 : f32 to vector<8x128xf32>
    %39 = arith.select %37, %34, %38 : vector<8x128xi1>, vector<8x128xf32>
    %cst_25 = arith.constant dense<0xFF800000> : vector<8xf32>
    %40 = vector.multi_reduction <maximumf>, %39, %cst_25 [1] : vector<8x128xf32> to vector<8xf32>
    %41 = vector.shape_cast %40 : vector<8xf32> to vector<8x1xf32>
    %42 = vector.broadcast %41 : vector<8x1xf32> to vector<8x128xf32>
    %43 = arith.subf %39, %42 : vector<8x128xf32>
    %44 = math.exp %43 : vector<8x128xf32>
    %cst_26 = arith.constant 0.000000e+00 : f32
    %45 = vector.broadcast %cst_26 : f32 to vector<8x128xf32>
    %46 = arith.select %37, %44, %45 : vector<8x128xi1>, vector<8x128xf32>
    %cst_27 = arith.constant dense<0.000000e+00> : vector<8xf32>
    %47 = vector.multi_reduction <add>, %46, %cst_27 [1] : vector<8x128xf32> to vector<8xf32>
    %48 = vector.shape_cast %47 : vector<8xf32> to vector<8x1xf32>
    %49 = tpu.reciprocal %48 : vector<8x1xf32> -> vector<8x1xf32>
    %50 = vector.broadcast %49 : vector<8x1xf32> to vector<8x128xf32>
    %51 = arith.mulf %46, %50 : vector<8x128xf32>
    %52 = vector.extract_strided_slice %51 {offsets = [0, 0], sizes = [8, 8], strides = [1, 1]} : vector<8x128xf32> to vector<8x8xf32>
    %c0_28 = arith.constant 0 : index
    %c0_29 = arith.constant 0 : index
    %53 = vector.load %arg4[%c0_28, %c0_29] : memref<8x9xf32, #tpu.memory_space<vmem>>, vector<8x8xf32>
    tpu.vector_store %arg4[%c0_28, %c0_29], %52 {strides = array<i32>} : memref<8x9xf32, #tpu.memory_space<vmem>>, vector<8x8xf32>,
    %54 = vector.extract_strided_slice %34 {offsets = [0, 8], sizes = [8, 1], strides = [1, 1]} : vector<8x128xf32> to vector<8x1xf32>
    %c0_30 = arith.constant 0 : index
    %c8 = arith.constant 8 : index
    %55 = vector.load %arg4[%c0_30, %c8] : memref<8x9xf32, #tpu.memory_space<vmem>>, vector<8x1xf32>
    tpu.vector_store %arg4[%c0_30, %c8], %54 {strides = array<i32>} : memref<8x9xf32, #tpu.memory_space<vmem>>, vector<8x1xf32>,
    return
  }
  func.func @transform_0(%arg0: i32) -> (i32, i32) {
    %c0_i32 = arith.constant 0 : i32
    %c0_i32_0 = arith.constant 0 : i32
    return %arg0, %c0_i32 : i32, i32
  }
  func.func @transform_1(%arg0: i32) -> (i32, i32, i32) {
    %c0_i32 = arith.constant 0 : i32
    %c0_i32_0 = arith.constant 0 : i32
    %c0_i32_1 = arith.constant 0 : i32
    %c0_i32_2 = arith.constant 0 : i32
    return %c0_i32, %c0_i32_0, %c0_i32_1 : i32, i32, i32
  }
  func.func @transform_2(%arg0: i32) -> (i32, i32) {
    %c0_i32 = arith.constant 0 : i32
    %c0_i32_0 = arith.constant 0 : i32
    %c0_i32_1 = arith.constant 0 : i32
    return %c0_i32, %c0_i32_0 : i32, i32
  }
  func.func @transform_3(%arg0: i32) -> (i32, i32) {
    %c0_i32 = arith.constant 0 : i32
    %c0_i32_0 = arith.constant 0 : i32
    return %arg0, %c0_i32 : i32, i32
  }
}

</mosaic_0001>

<llo_original>
// kernel: tpu_custom_call.1
$region0: #{tpu_custom_call.1}
  #allocation0 [shape = 'u32[]', space=smem, size = 0x4, offset = 0x4, fixed_abs, tag = 'smem constant byte address 0x4 - core index']
  #allocation1 [shape = 'u32[144,128]{1,0:T(1,128)}', space=vmem, size = 0x12000, scoped, tag = 'internal scratch']
  %s0 = inlined_call_operand.hbm [shape: f32[8,16], index: 0, kind: input, shape index: {}]
  %s1 = inlined_call_operand.hbm [shape: bf16[4,128,128], index: 1, kind: input, shape index: {}]
  %s2 = inlined_call_operand.vmem [shape: f32[4,128], index: 2, kind: input, shape index: {}]
  %s3 = inlined_call_operand.hbm [shape: f32[8,9], index: 3, kind: output, shape index: {}]
  %s4 = sld [smem:[#allocation0]]
  $region30: #{tpu_custom_call.1} parent=0
    _
  %s6 = ssub.s32 1, %s4
  %s7 = scalar_select 0, %s6, %s4
  $region1: #{tpu_custom_call.1} parent=0
    #allocation2 [shape = 'u8[4096]{0}', space=vmem, size = 0x1000, scoped, tag = 'input window, operand 0, single buffered']
    #allocation3 [shape = 's32[1]{0}', space=sflag, size = 0x4, scoped, tag = 'scoped memory for tpu_custom_call.1']
    #allocation4 [shape = 's32[1]{0}', space=sflag, size = 0x4, scoped, tag = 'scoped memory for tpu_custom_call.1']
    #allocation5 [shape = 'u8[131072]{0}', space=vmem, size = 0x20000, scoped, tag = 'input window, operand 1, single buffered']
    #allocation6 [shape = 's32[1]{0}', space=sflag, size = 0x4, scoped, tag = 'scoped memory for tpu_custom_call.1']
    #allocation7 [shape = 'u8[4096]{0}', space=vmem, size = 0x1000, scoped, tag = 'output window, operand 0, single buffered']
    %8 = vsyncpa [#allocation3], 0
    %9 = vsyncpa [#allocation6], 0
    %10 = vsyncpa [#allocation4], 0
    // Predicated region
    $region2: #{tpu_custom_call.1} parent=1 // pred_check
      _
    $region3: #{tpu_custom_call.1} parent=1 // pred_check_branch
      %12 = sbr.rel (0) target = $region5
    $region4: #{tpu_custom_call.1} parent=1 // pred_region
      %s14 = ssub.s32 128, 128
      %15 = vsyncadd [#allocation3], %s14
      %s17 = sshll.u32 [#allocation2], 4
      %s18 = int_to_ptr.vmem [resolvable:$true] %s17
      %20 = dma.hbm_to_vmem [thread:$0]  %s0, 128, %s18, [#allocation3]
    $region5: #{tpu_custom_call.1} parent=1 // pred_fallthru
      _
    // Predicated region
    $region6: #{tpu_custom_call.1} parent=1 // pred_check
      _
    $region7: #{tpu_custom_call.1} parent=1 // pred_check_branch
      %22 = sbr.rel (0) target = $region9
    $region8: #{tpu_custom_call.1} parent=1 // pred_region
      %s24 = ssub.s32 4096, 4096
      %25 = vsyncadd [#allocation6], %s24
      %s26 = sshll.u32 [#allocation5], 4
      %s27 = int_to_ptr.vmem [resolvable:$true] %s26
      %32 = dma.hbm_to_vmem [thread:$0]  %s1, 4096, %s27, [#allocation6], 64, 64, 4
    $region9: #{tpu_custom_call.1} parent=1 // pred_fallthru
      _
    // Predicated region
    $region10: #{tpu_custom_call.1} parent=1 // pred_check
      _
    $region11: #{tpu_custom_call.1} parent=1 // pred_check_branch
      %34 = sbr.rel (0) target = $region13
    $region12: #{tpu_custom_call.1} parent=1 // pred_region
      _
    $region13: #{tpu_custom_call.1} parent=1 // pred_fallthru
      _
    // Predicated region
    $region14: #{tpu_custom_call.1} parent=1 // pred_check
      _
    $region15: #{tpu_custom_call.1} parent=1 // pred_check_branch
      %36 = sbr.rel (0) target = $region17
    $region16: #{tpu_custom_call.1} parent=1 // pred_region
      %37 = dma.done [#allocation3], 128
    $region17: #{tpu_custom_call.1} parent=1 // pred_fallthru
      _
    // Predicated region
    $region18: #{tpu_custom_call.1} parent=1 // pred_check
      _
    $region19: #{tpu_custom_call.1} parent=1 // pred_check_branch
      %39 = sbr.rel (0) target = $region21
    $region20: #{tpu_custom_call.1} parent=1 // pred_region
      %40 = dma.done [#allocation6], 4096
    $region21: #{tpu_custom_call.1} parent=1 // pred_fallthru
      _
    %v42 = vld [vmem:[#allocation2] sm:$0xff]
    %v43 = vpack.c.bf16 %v42, %v42
    %v44 = vld [vmem:[#allocation5] sm:$0xf]
    %v45 = vld [vmem:[#allocation5 + $0x4] sm:$0xf]
    %v46 = vld [vmem:[%s2] sm:$0x1]
    %v47 = vlaneseq
    %v48 = vshrl.u32 %v47, 7
    %v49 = vsub.s32 0, %v48
    %v50 = vrot.slane %v46, %v49
    %v53 = vunpack.c.l.b16 %v44
    %v54 = vunpack.c.l.b16 %v45
    %v55 = vpack.c.b16 %v54, %v53
    %vm57 = vcmask 130048
    %v59 = vsel %vm57, %v43, 0
    %61 = vmatprep.subr.bf16.mxu0 0
    %62 = vmatpush1.bf16.msra.mxu0 %v55
    %63 = vmatprep.subr.bf16.mxu0 0
    %64 = vmatpush1.bf16.msra.mxu0 0
    %65 = vmatprep.subr.bf16.mxu0 0
    %66 = vmatpush1.bf16.msra.mxu0 0
    %67 = vmatprep.subr.bf16.mxu0 0
    %68 = vmatpush1.bf16.msra.mxu0 0
    %69 = vmatprep.subr.bf16.mxu0 0
    %70 = vmatpush1.bf16.msra.mxu0 0
    %71 = vmatprep.subr.bf16.mxu0 0
    %72 = vmatpush1.bf16.msra.mxu0 0
    %73 = vmatprep.subr.bf16.mxu0 0
    %74 = vmatpush1.bf16.msra.mxu0 0
    %75 = vmatprep.subr.bf16.mxu0 0
    %76 = vmatpush1.bf16.msra.mxu0 0
    %77 = vmatprep.subr.bf16.mxu0 0
    %78 = vmatpush1.bf16.msra.mxu0 0
    %79 = vmatprep.subr.bf16.mxu0 0
    %80 = vmatpush1.bf16.msra.mxu0 0
    %81 = vmatprep.subr.bf16.mxu0 0
    %82 = vmatpush1.bf16.msra.mxu0 0
    %83 = vmatprep.subr.bf16.mxu0 0
    %84 = vmatpush1.bf16.msra.mxu0 0
    %85 = vmatprep.subr.bf16.mxu0 0
    %86 = vmatpush1.bf16.msra.mxu0 0
    %87 = vmatprep.subr.bf16.mxu0 0
    %88 = vmatpush1.bf16.msra.mxu0 0
    %89 = vmatprep.subr.bf16.mxu0 0
    %90 = vmatpush1.bf16.msra.mxu0 0
    %91 = vmatprep.subr.bf16.mxu0 0
    %92 = vmatpush1.bf16.msra.mxu0 0
    %93 = vmatprep.mubr.bf16.mxu0 0
    %94 = vmatmul.mubr.bf16.gmra.mrb[0].mxu0 %v59
    %v95 = vpop.f32.mrb[0].mxu0
    %v96 = vadd.f32 %v50, %v95
    %v97 = vpop.f32.mrb[0].mxu0
    %v98 = vpop.f32.mrb[0].mxu0
    %v99 = vpop.f32.mrb[0].mxu0
    %100 = vdwg.mxu0
    %v101 = vmax.f32 %v96, 0.0
    %v102 = vpack.c.bf16 %v101, %v101
    %s103 = scalar_lea.vmem [#allocation5], 64
    %v104 = vld [vmem:[%s103] sm:$0xf]
    %v105 = vld [vmem:[%s103 + $0x4] sm:$0xf]
    %v106 = vld [vmem:[%s103 + $0x8] sm:$0xf]
    %v107 = vld [vmem:[%s103 + $0xc] sm:$0xf]
    %v108 = vld [vmem:[%s103 + $0x10] sm:$0xf]
    %v109 = vld [vmem:[%s103 + $0x14] sm:$0xf]
    %v110 = vld [vmem:[%s103 + $0x18] sm:$0xf]
    %v111 = vld [vmem:[%s103 + $0x1c] sm:$0xf]
    %v112 = vld [vmem:[%s103 + $0x20] sm:$0xf]
    %v113 = vld [vmem:[%s103 + $0x24] sm:$0xf]
    %v114 = vld [vmem:[%s103 + $0x28] sm:$0xf]
    %v115 = vld [vmem:[%s103 + $0x2c] sm:$0xf]
    %v116 = vld [vmem:[%s103 + $0x30] sm:$0xf]
    %v117 = vld [vmem:[%s103 + $0x34] sm:$0xf]
    %v118 = vld [vmem:[%s103 + $0x38] sm:$0xf]
    %v119 = vld [vmem:[%s103 + $0x3c] sm:$0xf]
    %v120 = vld [vmem:[%s2 + $0x1] sm:$0x1]
    %v121 = vlaneseq
    %v122 = vshrl.u32 %v121, 7
    %v123 = vsub.s32 0, %v122
    %v124 = vrot.slane %v120, %v123
    %v141 = vunpack.c.l.b16 %v104
    %v142 = vunpack.c.l.b16 %v105
    %v143 = vunpack.c.l.b16 %v106
    %v144 = vunpack.c.l.b16 %v107
    %v145 = vunpack.c.l.b16 %v108
    %v146 = vunpack.c.l.b16 %v109
    %v147 = vunpack.c.l.b16 %v110
    %v148 = vunpack.c.l.b16 %v111
    %v149 = vunpack.c.l.b16 %v112
    %v150 = vunpack.c.l.b16 %v113
    %v151 = vunpack.c.l.b16 %v114
    %v152 = vunpack.c.l.b16 %v115
    %v153 = vunpack.c.l.b16 %v116
    %v154 = vunpack.c.l.b16 %v117
    %v155 = vunpack.c.l.b16 %v118
    %v156 = vunpack.c.l.b16 %v119
    %v157 = vpack.c.b16 %v142, %v141
    %v158 = vpack.c.b16 %v144, %v143
    %v159 = vpack.c.b16 %v146, %v145
    %v160 = vpack.c.b16 %v148, %v147
    %v161 = vpack.c.b16 %v150, %v149
    %v162 = vpack.c.b16 %v152, %v151
    %v163 = vpack.c.b16 %v154, %v153
    %v164 = vpack.c.b16 %v156, %v155
    %173 = vmatprep.subr.bf16.mxu0 0
    %174 = vmatpush1.bf16.msra.mxu0 %v157
    %175 = vmatprep.subr.bf16.mxu0 0
    %176 = vmatpush1.bf16.msra.mxu0 %v158
    %177 = vmatprep.subr.bf16.mxu0 0
    %178 = vmatpush1.bf16.msra.mxu0 %v159
    %179 = vmatprep.subr.bf16.mxu0 0
    %180 = vmatpush1.bf16.msra.mxu0 %v160
    %181 = vmatprep.subr.bf16.mxu0 0
    %182 = vmatpush1.bf16.msra.mxu0 %v161
    %183 = vmatprep.subr.bf16.mxu0 0
    %184 = vmatpush1.bf16.msra.mxu0 %v162
    %185 = vmatprep.subr.bf16.mxu0 0
    %186 = vmatpush1.bf16.msra.mxu0 %v163
    %187 = vmatprep.subr.bf16.mxu0 0
    %188 = vmatpush1.bf16.msra.mxu0 %v164
    %189 = vmatprep.subr.bf16.mxu0 0
    %190 = vmatpush1.bf16.msra.mxu0 0
    %191 = vmatprep.subr.bf16.mxu0 0
    %192 = vmatpush1.bf16.msra.mxu0 0
    %193 = vmatprep.subr.bf16.mxu0 0
    %194 = vmatpush1.bf16.msra.mxu0 0
    %195 = vmatprep.subr.bf16.mxu0 0
    %196 = vmatpush1.bf16.msra.mxu0 0
    %197 = vmatprep.subr.bf16.mxu0 0
    %198 = vmatpush1.bf16.msra.mxu0 0
    %199 = vmatprep.subr.bf16.mxu0 0
    %200 = vmatpush1.bf16.msra.mxu0 0
    %201 = vmatprep.subr.bf16.mxu0 0
    %202 = vmatpush1.bf16.msra.mxu0 0
    %203 = vmatprep.subr.bf16.mxu0 0
    %204 = vmatpush1.bf16.msra.mxu0 0
    %205 = vmatprep.mubr.bf16.mxu0 0
    %206 = vmatmul.mubr.bf16.gmra.mrb[0].mxu0 %v102
    %v207 = vpop.f32.mrb[0].mxu0
    %v208 = vadd.f32 %v124, %v207
    %v209 = vpop.f32.mrb[0].mxu0
    %v210 = vpop.f32.mrb[0].mxu0
    %v211 = vpop.f32.mrb[0].mxu0
    %212 = vdwg.mxu0
    %v213 = vmax.f32 %v208, 0.0
    %v214 = vpack.c.bf16 %v213, %v213
    %s215 = scalar_lea.vmem [#allocation5], 128
    %v216 = vld [vmem:[%s215] sm:$0xf]
    %v217 = vld [vmem:[%s215 + $0x4] sm:$0xf]
    %v218 = vld [vmem:[%s215 + $0x8] sm:$0xf]
    %v219 = vld [vmem:[%s215 + $0xc] sm:$0xf]
    %v220 = vld [vmem:[%s215 + $0x10] sm:$0xf]
    %v221 = vld [vmem:[%s215 + $0x14] sm:$0xf]
    %v222 = vld [vmem:[%s215 + $0x18] sm:$0xf]
    %v223 = vld [vmem:[%s215 + $0x1c] sm:$0xf]
    %v224 = vld [vmem:[%s215 + $0x20] sm:$0xf]
    %v225 = vld [vmem:[%s215 + $0x24] sm:$0xf]
    %v226 = vld [vmem:[%s215 + $0x28] sm:$0xf]
    %v227 = vld [vmem:[%s215 + $0x2c] sm:$0xf]
    %v228 = vld [vmem:[%s215 + $0x30] sm:$0xf]
    %v229 = vld [vmem:[%s215 + $0x34] sm:$0xf]
    %v230 = vld [vmem:[%s215 + $0x38] sm:$0xf]
    %v231 = vld [vmem:[%s215 + $0x3c] sm:$0xf]
    %v232 = vld [vmem:[%s2 + $0x2] sm:$0x1]
    %v233 = vlaneseq
    %v234 = vshrl.u32 %v233, 7
    %v235 = vsub.s32 0, %v234
    %v236 = vrot.slane %v232, %v235
    %v253 = vunpack.c.l.b16 %v216
    %v254 = vunpack.c.l.b16 %v217
    %v255 = vunpack.c.l.b16 %v218
    %v256 = vunpack.c.l.b16 %v219
    %v257 = vunpack.c.l.b16 %v220
    %v258 = vunpack.c.l.b16 %v221
    %v259 = vunpack.c.l.b16 %v222
    %v260 = vunpack.c.l.b16 %v223
    %v261 = vunpack.c.l.b16 %v224
    %v262 = vunpack.c.l.b16 %v225
    %v263 = vunpack.c.l.b16 %v226
    %v264 = vunpack.c.l.b16 %v227
    %v265 = vunpack.c.l.b16 %v228
    %v266 = vunpack.c.l.b16 %v229
    %v267 = vunpack.c.l.b16 %v230
    %v268 = vunpack.c.l.b16 %v231
    %v269 = vpack.c.b16 %v254, %v253
    %v270 = vpack.c.b16 %v256, %v255
    %v271 = vpack.c.b16 %v258, %v257
    %v272 = vpack.c.b16 %v260, %v259
    %v273 = vpack.c.b16 %v262, %v261
    %v274 = vpack.c.b16 %v264, %v263
    %v275 = vpack.c.b16 %v266, %v265
    %v276 = vpack.c.b16 %v268, %v267
    %285 = vmatprep.subr.bf16.mxu0 0
    %286 = vmatpush1.bf16.msra.mxu0 %v269
    %287 = vmatprep.subr.bf16.mxu0 0
    %288 = vmatpush1.bf16.msra.mxu0 %v270
    %289 = vmatprep.subr.bf16.mxu0 0
    %290 = vmatpush1.bf16.msra.mxu0 %v271
    %291 = vmatprep.subr.bf16.mxu0 0
    %292 = vmatpush1.bf16.msra.mxu0 %v272
    %293 = vmatprep.subr.bf16.mxu0 0
    %294 = vmatpush1.bf16.msra.mxu0 %v273
    %295 = vmatprep.subr.bf16.mxu0 0
    %296 = vmatpush1.bf16.msra.mxu0 %v274
    %297 = vmatprep.subr.bf16.mxu0 0
    %298 = vmatpush1.bf16.msra.mxu0 %v275
    %299 = vmatprep.subr.bf16.mxu0 0
    %300 = vmatpush1.bf16.msra.mxu0 %v276
    %301 = vmatprep.subr.bf16.mxu0 0
    %302 = vmatpush1.bf16.msra.mxu0 0
    %303 = vmatprep.subr.bf16.mxu0 0
    %304 = vmatpush1.bf16.msra.mxu0 0
    %305 = vmatprep.subr.bf16.mxu0 0
    %306 = vmatpush1.bf16.msra.mxu0 0
    %307 = vmatprep.subr.bf16.mxu0 0
    %308 = vmatpush1.bf16.msra.mxu0 0
    %309 = vmatprep.subr.bf16.mxu0 0
    %310 = vmatpush1.bf16.msra.mxu0 0
    %311 = vmatprep.subr.bf16.mxu0 0
    %312 = vmatpush1.bf16.msra.mxu0 0
    %313 = vmatprep.subr.bf16.mxu0 0
    %314 = vmatpush1.bf16.msra.mxu0 0
    %315 = vmatprep.subr.bf16.mxu0 0
    %316 = vmatpush1.bf16.msra.mxu0 0
    %317 = vmatprep.mubr.bf16.mxu0 0
    %318 = vmatmul.mubr.bf16.gmra.mrb[0].mxu0 %v214
    %v319 = vpop.f32.mrb[0].mxu0
    %v320 = vadd.f32 %v236, %v319
    %v321 = vpop.f32.mrb[0].mxu0
    %v322 = vpop.f32.mrb[0].mxu0
    %v323 = vpop.f32.mrb[0].mxu0
    %324 = vdwg.mxu0
    %v325 = vmax.f32 %v320, 0.0
    %v326 = vpack.c.bf16 %v325, %v325
    %s327 = scalar_lea.vmem [#allocation5], 192
    %v328 = vld [vmem:[%s327] sm:$0xf]
    %v329 = vld [vmem:[%s327 + $0x4] sm:$0xf]
    %v330 = vld [vmem:[%s327 + $0x8] sm:$0xf]
    %v331 = vld [vmem:[%s327 + $0xc] sm:$0xf]
    %v332 = vld [vmem:[%s327 + $0x10] sm:$0xf]
    %v333 = vld [vmem:[%s327 + $0x14] sm:$0xf]
    %v334 = vld [vmem:[%s327 + $0x18] sm:$0xf]
    %v335 = vld [vmem:[%s327 + $0x1c] sm:$0xf]
    %v336 = vld [vmem:[%s327 + $0x20] sm:$0xf]
    %v337 = vld [vmem:[%s327 + $0x24] sm:$0xf]
    %v338 = vld [vmem:[%s327 + $0x28] sm:$0xf]
    %v339 = vld [vmem:[%s327 + $0x2c] sm:$0xf]
    %v340 = vld [vmem:[%s327 + $0x30] sm:$0xf]
    %v341 = vld [vmem:[%s327 + $0x34] sm:$0xf]
    %v342 = vld [vmem:[%s327 + $0x38] sm:$0xf]
    %v343 = vld [vmem:[%s327 + $0x3c] sm:$0xf]
    %v344 = vld [vmem:[%s2 + $0x3] sm:$0x1]
    %v345 = vlaneseq
    %v346 = vshrl.u32 %v345, 7
    %v347 = vsub.s32 0, %v346
    %v348 = vrot.slane %v344, %v347
    %v365 = vunpack.c.l.b16 %v328
    %v366 = vunpack.c.l.b16 %v329
    %v367 = vunpack.c.l.b16 %v330
    %v368 = vunpack.c.l.b16 %v331
    %v369 = vunpack.c.l.b16 %v332
    %v370 = vunpack.c.l.b16 %v333
    %v371 = vunpack.c.l.b16 %v334
    %v372 = vunpack.c.l.b16 %v335
    %v373 = vunpack.c.l.b16 %v336
    %v374 = vunpack.c.l.b16 %v337
    %v375 = vunpack.c.l.b16 %v338
    %v376 = vunpack.c.l.b16 %v339
    %v377 = vunpack.c.l.b16 %v340
    %v378 = vunpack.c.l.b16 %v341
    %v379 = vunpack.c.l.b16 %v342
    %v380 = vunpack.c.l.b16 %v343
    %v381 = vpack.c.b16 %v366, %v365
    %v382 = vpack.c.b16 %v368, %v367
    %v383 = vpack.c.b16 %v370, %v369
    %v384 = vpack.c.b16 %v372, %v371
    %v385 = vpack.c.b16 %v374, %v373
    %v386 = vpack.c.b16 %v376, %v375
    %v387 = vpack.c.b16 %v378, %v377
    %v388 = vpack.c.b16 %v380, %v379
    %397 = vmatprep.subr.bf16.mxu0 0
    %398 = vmatpush1.bf16.msra.mxu0 %v381
    %399 = vmatprep.subr.bf16.mxu0 0
    %400 = vmatpush1.bf16.msra.mxu0 %v382
    %401 = vmatprep.subr.bf16.mxu0 0
    %402 = vmatpush1.bf16.msra.mxu0 %v383
    %403 = vmatprep.subr.bf16.mxu0 0
    %404 = vmatpush1.bf16.msra.mxu0 %v384
    %405 = vmatprep.subr.bf16.mxu0 0
    %406 = vmatpush1.bf16.msra.mxu0 %v385
    %407 = vmatprep.subr.bf16.mxu0 0
    %408 = vmatpush1.bf16.msra.mxu0 %v386
    %409 = vmatprep.subr.bf16.mxu0 0
    %410 = vmatpush1.bf16.msra.mxu0 %v387
    %411 = vmatprep.subr.bf16.mxu0 0
    %412 = vmatpush1.bf16.msra.mxu0 %v388
    %413 = vmatprep.subr.bf16.mxu0 0
    %414 = vmatpush1.bf16.msra.mxu0 0
    %415 = vmatprep.subr.bf16.mxu0 0
    %416 = vmatpush1.bf16.msra.mxu0 0
    %417 = vmatprep.subr.bf16.mxu0 0
    %418 = vmatpush1.bf16.msra.mxu0 0
    %419 = vmatprep.subr.bf16.mxu0 0
    %420 = vmatpush1.bf16.msra.mxu0 0
    %421 = vmatprep.subr.bf16.mxu0 0
    %422 = vmatpush1.bf16.msra.mxu0 0
    %423 = vmatprep.subr.bf16.mxu0 0
    %424 = vmatpush1.bf16.msra.mxu0 0
    %425 = vmatprep.subr.bf16.mxu0 0
    %426 = vmatpush1.bf16.msra.mxu0 0
    %427 = vmatprep.subr.bf16.mxu0 0
    %428 = vmatpush1.bf16.msra.mxu0 0
    %429 = vmatprep.mubr.bf16.mxu0 0
    %430 = vmatmul.mubr.bf16.gmra.mrb[0].mxu0 %v326
    %v431 = vpop.f32.mrb[0].mxu0
    %v432 = vadd.f32 %v348, %v431
    %v433 = vpop.f32.mrb[0].mxu0
    %v434 = vpop.f32.mrb[0].mxu0
    %v435 = vpop.f32.mrb[0].mxu0
    %436 = vdwg.mxu0
    %v437 = vlaneseq
    %v438 = vand.u32 %v437, 127
    %vm439 = vcmp.lt.s32.totalorder %v438, 8
    %v440 = vsel %vm439, %v432, -1e+30
    %441 = vmax.xlane.f32.xlu0 %v440
    %v442 = vpop.xlane.xlu0 %441
    %v443 = vsub.f32 %v440, %v442
    %v444 = vmul.f32 %v443, 1.442695
    %v445 = vpow.pop %v444
    %v446 = vsel %vm439, %v445, 0.0
    %447 = vadd.xlane.f32.xlu0 %v446
    %v448 = vpop.xlane.xlu0 %447
    %v449 = vrcp.pop %v448
    %v450 = vmul.f32 %v446, %v449
    %vm451 = vcmask 64512
    %452 = vst.msk [vmem:[#allocation7] sm:$0xff] %vm451, %v450
    %vm453 = vcmask 72768
    %454 = vst.msk [vmem:[#allocation7] sm:$0xff] %vm453, %v432
    // Predicated region
    $region22: #{tpu_custom_call.1} parent=1 // pred_check
      _
    $region23: #{tpu_custom_call.1} parent=1 // pred_check_branch
      %456 = sbr.rel (0) target = $region25
    $region24: #{tpu_custom_call.1} parent=1 // pred_region
      %s458 = ssub.s32 128, 128
      %459 = vsyncadd [#allocation4], %s458
      %s461 = sshll.u32 [#allocation7], 4
      %s462 = int_to_ptr.vmem [resolvable:$true] %s461
      %464 = dma.vmem_to_hbm [thread:$0]  %s462, 128, %s3, [#allocation4]
    $region25: #{tpu_custom_call.1} parent=1 // pred_fallthru
      _
    // Predicated region
    $region26: #{tpu_custom_call.1} parent=1 // pred_check
      _
    $region27: #{tpu_custom_call.1} parent=1 // pred_check_branch
      %466 = sbr.rel (0) target = $region29
    $region28: #{tpu_custom_call.1} parent=1 // pred_region
      %467 = dma.done [#allocation4], 128
    $region29: #{tpu_custom_call.1} parent=1 // pred_fallthru
      _
    %468 = vsyncpa [#allocation3], 1
    %469 = vsyncpa [#allocation6], 1
    %470 = vsyncpa [#allocation4], 1

</llo_original>
